<compile_context>
chip_gen: v6e
topology: v6e:2x2x1
jax: 0.10.0
libtpu: 0.0.40
codegen_flags: <defaults>
</compile_context>

<pallas_src>
import math

import jax
import jax.numpy as jnp
from jax.experimental import pallas as pl
from jax.experimental.pallas import tpu as pltpu


_EPS = 1e-8


# --------------------------- sizing helpers ---------------------------------


def _vmem_budgets():
    """(per-step working-set budget, scoped vmem limit) from the chip's VMEM size."""
    cap = 64 * 1024 * 1024  # conservative default == v7x per-TensorCore VMEM
    try:
        info_fn = getattr(pltpu, "get_tpu_info", None)
        if info_fn is not None:
            cap = int(info_fn().vmem_capacity_bytes)
    except Exception:
        pass
    if cap <= 64 * 1024 * 1024:                       # v7x: 64 MiB per TC
        return 24 * 1024 * 1024, 40 * 1024 * 1024
    return 64 * 1024 * 1024, 96 * 1024 * 1024         # v5e / v6e: 128 MiB


def _block_bytes(bt, t, d, in_itemsize, out_itemsize):
    # 2x double-buffered input + 2x double-buffered output + ~2 fp32 temporaries.
    return bt * t * d * (2 * in_itemsize + 2 * out_itemsize + 2 * 4)


def _sublane(dtype):
    # packed sublane rows per vreg: 8 (f32), 16 (bf16/f16), 32 (int8/fp8)
    return 8 * max(1, 4 // jnp.dtype(dtype).itemsize)


def _compiler_params(semantics, est_bytes, vmem_limit):
    limit = vmem_limit if est_bytes > 12 * 1024 * 1024 else None
    return pltpu.CompilerParams(dimension_semantics=semantics, vmem_limit_bytes=limit)


# --------------------------- kernels ----------------------------------------


def _fused_kernel(gamma_ref, beta_ref, x_ref, o_ref):
    """Single-pass path: block = (bt, T, Dt); the full T axis lives in the block,
    so the InstanceNorm reduction is intra-block; batches/channels are independent."""
    x = x_ref[...].astype(jnp.float32)                    # (bt, T, Dt)
    mean = jnp.mean(x, axis=1, keepdims=True)             # (bt, 1, Dt)
    m2 = jnp.mean(x * x, axis=1, keepdims=True)
    var = jnp.maximum(m2 - mean * mean, 0.0)              # unbiased=False
    # Exact reciprocal on a (bt,1,Dt) tensor: negligible cost, keeps fp32-tight
    # agreement with the reference (approx EUP reciprocal would be free but lossier).
    inv = 1.0 / (jnp.sqrt(var) + _EPS)                    # (x - mean) / (std + eps)
    scale = gamma_ref[...] * inv                          # (bt, 1, Dt)
    shift = beta_ref[...] - mean * scale
    o_ref[...] = (x * scale + shift).astype(o_ref.dtype)  # single FMA per element


def _make_stats_kernel(seq_len, tile):
    """Two-pass path, pass 1: per-(batch, channel) sum / sum-of-squares with tail mask."""
    need_mask = (seq_len % tile) != 0

    def _stats_kernel(x_ref, sum_ref, sq_ref):
        @pl.when(pl.program_id(1) == 0)
        def _():
            sum_ref[...] = jnp.zeros_like(sum_ref)
            sq_ref[...] = jnp.zeros_like(sq_ref)

        x = x_ref[...].astype(jnp.float32)                # (1, tile, D)
        if need_mask:
            row = jax.lax.broadcasted_iota(jnp.int32, x.shape, 1)
            start = pl.program_id(1) * tile
            x = jnp.where(row + start < seq_len, x, 0.0)  # mask BEFORE squaring
        sum_ref[...] += jnp.sum(x, axis=1, keepdims=True)
        sq_ref[...] += jnp.sum(x * x, axis=1, keepdims=True)

    return _stats_kernel


def _apply_kernel(scale_ref, shift_ref, x_ref, o_ref):
    """Two-pass path, pass 2: pure streaming FMA out = x*scale + shift."""
    x = x_ref[...].astype(jnp.float32)                    # (1, tT, D)
    o_ref[...] = (x * scale_ref[...] + shift_ref[...]).astype(o_ref.dtype)


# --------------------------- wrapper -----------------------------------------


def adaptive_norm(x, w, weight_gamma, bias_gamma, weight_beta, bias_beta,
                  *, _vmem_override=None):
    """x: (B, T, D), w: (B, w_dim), weights pre-transposed (w_dim, D), biases (D,)."""
    B, T, D = x.shape
    _, w_dim = w.shape
    gain = 1.0 / math.sqrt(w_dim)

    # ---- gamma(w), beta(w) hoisted out of the kernel (tiny matmul, XLA-fused) ----
    wf = w.astype(jnp.float32)
    gamma = (wf @ weight_gamma.astype(jnp.float32)) * gain + bias_gamma.astype(jnp.float32)
    beta = (wf @ weight_beta.astype(jnp.float32)) * gain + bias_beta.astype(jnp.float32)
    gamma = gamma.reshape(B, 1, D)                        # (B, 1, D) fp32
    beta = beta.reshape(B, 1, D)

    if _vmem_override is None:
        budget, vmem_limit = _vmem_budgets()
    else:
        budget, vmem_limit = int(_vmem_override), 40 * 1024 * 1024

    in_b = out_b = x.dtype.itemsize
    per_batch = _block_bytes(1, T, D, in_b, out_b)

    # ---------------- Path A: single-pass, batch-tiled fused kernel ----------------
    if per_batch <= budget:
        bt = max(1, min(B, budget // max(per_batch, 1)))
        if B >= 4:
            # keep >= 4 grid steps: double-buffering stays busy and both v7x TCs get work
            bt = min(bt, max(1, B // 4))
        n_b = pl.cdiv(B, bt)
        est = _block_bytes(bt, T, D, in_b, out_b)
        return pl.pallas_call(
            _fused_kernel,
            out_shape=jax.ShapeDtypeStruct((B, T, D), x.dtype),
            grid_spec=pltpu.PrefetchScalarGridSpec(
                num_scalar_prefetch=0,
                grid=(n_b,),
                in_specs=[
                    pl.BlockSpec((bt, 1, D), lambda i: (i, 0, 0)),   # gamma
                    pl.BlockSpec((bt, 1, D), lambda i: (i, 0, 0)),   # beta
                    pl.BlockSpec((bt, T, D), lambda i: (i, 0, 0)),   # x
                ],
                out_specs=pl.BlockSpec((bt, T, D), lambda i: (i, 0, 0)),
            ),
            compiler_params=_compiler_params(("parallel",), est, vmem_limit),
        )(gamma, beta, x)

    # ------------- Path B: single-pass, channel-tiled fused kernel (D >= 128) -------------
    if D >= 128 and _block_bytes(1, T, 128, in_b, out_b) <= budget:
        per_128 = _block_bytes(1, T, 128, in_b, out_b)
        dt = 128 * max(1, budget // per_128)
        dt = min(dt, (D // 128) * 128)                    # lane-aligned tile, <= D
        n_d = pl.cdiv(D, dt)
        est = _block_bytes(1, T, dt, in_b, out_b)
        return pl.pallas_call(
            _fused_kernel,
            out_shape=jax.ShapeDtypeStruct((B, T, D), x.dtype),
            grid_spec=pltpu.PrefetchScalarGridSpec(
                num_scalar_prefetch=0,
                grid=(B, n_d),
                in_specs=[
                    pl.BlockSpec((1, 1, dt), lambda b, d: (b, 0, d)),   # gamma
                    pl.BlockSpec((1, 1, dt), lambda b, d: (b, 0, d)),   # beta
                    pl.BlockSpec((1, T, dt), lambda b, d: (b, 0, d)),   # x
                ],
                out_specs=pl.BlockSpec((1, T, dt), lambda b, d: (b, 0, d)),
            ),
            compiler_params=_compiler_params(("parallel", "parallel"), est, vmem_limit),
        )(gamma, beta, x)

    # ------------- Path C: two-pass T-tiled fallback (D < 128 with huge T) -------------
    sub = _sublane(x.dtype)
    per_sub = _block_bytes(1, sub, D, in_b, out_b)
    tt = sub * max(1, budget // max(per_sub, 1))
    tt = min(tt, ((T + sub - 1) // sub) * sub)            # sublane-aligned, cdiv grid
    n_t = pl.cdiv(T, tt)
    est = _block_bytes(1, tt, D, in_b, out_b)

    sums, sqs = pl.pallas_call(
        _make_stats_kernel(T, tt),
        out_shape=(jax.ShapeDtypeStruct((B, 1, D), jnp.float32),
                   jax.ShapeDtypeStruct((B, 1, D), jnp.float32)),
        grid_spec=pltpu.PrefetchScalarGridSpec(
            num_scalar_prefetch=0,
            grid=(B, n_t),
            in_specs=[pl.BlockSpec((1, tt, D), lambda b, t: (b, t, 0))],
            out_specs=(pl.BlockSpec((1, 1, D), lambda b, t: (b, 0, 0)),
                       pl.BlockSpec((1, 1, D), lambda b, t: (b, 0, 0))),
        ),
        compiler_params=_compiler_params(("parallel", "arbitrary"), est, vmem_limit),
    )(x)

    mean = sums / T                                       # (B, 1, D)
    var = jnp.maximum(sqs / T - mean * mean, 0.0)         # same uncentered form as fused
    inv = 1.0 / (jnp.sqrt(var) + _EPS)
    scale = gamma * inv
    shift = beta - mean * scale

    return pl.pallas_call(
        _apply_kernel,
        out_shape=jax.ShapeDtypeStruct((B, T, D), x.dtype),
        grid_spec=pltpu.PrefetchScalarGridSpec(
            num_scalar_prefetch=0,
            grid=(B, n_t),
            in_specs=[
                pl.BlockSpec((1, 1, D), lambda b, t: (b, 0, 0)),    # scale
                pl.BlockSpec((1, 1, D), lambda b, t: (b, 0, 0)),    # shift
                pl.BlockSpec((1, tt, D), lambda b, t: (b, t, 0)),   # x
            ],
            out_specs=pl.BlockSpec((1, tt, D), lambda b, t: (b, t, 0)),
        ),
        compiler_params=_compiler_params(("parallel", "parallel"), est, vmem_limit),
    )(scale, shift, x)


# --------------------------- reference & test --------------------------------


def adaptive_norm_ref(x, w, weight_gamma, bias_gamma, weight_beta, bias_beta):
    """Pure-JAX reference mirroring the PyTorch module."""
    w_dim = w.shape[-1]
    gain = 1.0 / math.sqrt(w_dim)
    xf = x.astype(jnp.float32)
    mean = xf.mean(axis=1, keepdims=True)
    std = jnp.sqrt(((xf - mean) ** 2).mean(axis=1, keepdims=True))
    xn = (xf - mean) / (std + _EPS)
    gamma = w.astype(jnp.float32) @ weight_gamma * gain + bias_gamma
    beta = w.astype(jnp.float32) @ weight_beta * gain + bias_beta
    out = xn * gamma[:, None, :] + beta[:, None, :]
    return out.astype(x.dtype)


if __name__ == "__main__":
    def make_inputs(B, T, D, W_DIM, key):
        kx, kw, kg, kb = jax.random.split(key, 4)
        x = jax.random.normal(kx, (B, T, D), dtype=jnp.float32)
        w = jax.random.normal(kw, (B, W_DIM), dtype=jnp.float32)
        # FullyConnectedLayer params: weight ~ randn(out, in) * weight_init, stored
        # pre-transposed as (in, out) = (w_dim, D); bias_init = 1.0 (gamma) / 0.0 (beta).
        weight_gamma = jax.random.normal(kg, (W_DIM, D), dtype=jnp.float32)
        bias_gamma = jnp.ones((D,), dtype=jnp.float32)
        weight_beta = jax.random.normal(kb, (W_DIM, D), dtype=jnp.float32)
        bias_beta = jnp.zeros((D,), dtype=jnp.float32)
        return x, w, weight_gamma, bias_gamma, weight_beta, bias_beta

    # Main check: path A (single-pass, batch-tiled fused kernel).
    args = make_inputs(2, 8, 32, 16, jax.random.PRNGKey(0))
    out = jax.block_until_ready(adaptive_norm(*args))
    ref = adaptive_norm_ref(*args)
    assert out.shape == args[0].shape and out.dtype == args[0].dtype
    assert jnp.allclose(out, ref, atol=1e-4, rtol=1e-4), "path A mismatch vs reference"

    # Path B (single-pass, channel-tiled, D >= 128): forced via a tiny VMEM budget.
    args_b = make_inputs(2, 16, 256, 16, jax.random.PRNGKey(1))
    out_b = jax.block_until_ready(adaptive_norm(*args_b, _vmem_override=60_000))
    assert jnp.allclose(out_b, adaptive_norm_ref(*args_b), atol=1e-4, rtol=1e-4), \
        "path B mismatch vs reference"

    # Path C (two-pass T-tiled fallback, T not a multiple of 8): forced budget.
    args_c = make_inputs(2, 60, 32, 16, jax.random.PRNGKey(2))
    out_c = jax.block_until_ready(adaptive_norm(*args_c, _vmem_override=4_096))
    assert jnp.allclose(out_c, adaptive_norm_ref(*args_c), atol=1e-4, rtol=1e-4), \
        "path C mismatch vs reference"

    print("KERNEL_OK")
</pallas_src>

<mosaic_0001>
module attributes {stable_mosaic.version = 11 : i64} {
  func.func @_fused_kernel(%arg0: i32, %arg1: memref<2x1x32xf32, #tpu.memory_space<vmem>>, %arg2: memref<2x1x32xf32, #tpu.memory_space<vmem>>, %arg3: memref<2x8x32xf32, #tpu.memory_space<vmem>>, %arg4: memref<2x8x32xf32, #tpu.memory_space<vmem>>) attributes {dimension_semantics = [#tpu.dimension_semantics<parallel>], iteration_bounds = array<i64: 1>, scalar_prefetch = 0 : i64, scratch_operands = 0 : i64, tpu.core_type = #tpu.core_type<tc>, window_params = [{transform_indices = @transform_0, window_bounds = array<i64: 2, 1, 32>}, {transform_indices = @transform_1, window_bounds = array<i64: 2, 1, 32>}, {transform_indices = @transform_2, window_bounds = array<i64: 2, 8, 32>}, {transform_indices = @transform_3, window_bounds = array<i64: 2, 8, 32>}]} {
    %c0 = arith.constant 0 : index
    %c0_0 = arith.constant 0 : index
    %c0_1 = arith.constant 0 : index
    %0 = vector.load %arg3[%c0, %c0_0, %c0_1] : memref<2x8x32xf32, #tpu.memory_space<vmem>>, vector<2x8x32xf32>
    %cst = arith.constant dense<0.000000e+00> : vector<2x32xf32>
    %1 = vector.multi_reduction <add>, %0, %cst [1] : vector<2x8x32xf32> to vector<2x32xf32>
    %2 = vector.shape_cast %1 : vector<2x32xf32> to vector<2x1x32xf32>
    %cst_2 = arith.constant 8.000000e+00 : f32
    %3 = vector.broadcast %cst_2 : f32 to vector<2x1x32xf32>
    %4 = arith.divf %2, %3 : vector<2x1x32xf32>
    %5 = arith.mulf %0, %0 : vector<2x8x32xf32>
    %cst_3 = arith.constant dense<0.000000e+00> : vector<2x32xf32>
    %6 = vector.multi_reduction <add>, %5, %cst_3 [1] : vector<2x8x32xf32> to vector<2x32xf32>
    %7 = vector.shape_cast %6 : vector<2x32xf32> to vector<2x1x32xf32>
    %cst_4 = arith.constant 8.000000e+00 : f32
    %8 = vector.broadcast %cst_4 : f32 to vector<2x1x32xf32>
    %9 = arith.divf %7, %8 : vector<2x1x32xf32>
    %10 = arith.mulf %4, %4 : vector<2x1x32xf32>
    %11 = arith.subf %9, %10 : vector<2x1x32xf32>
    %cst_5 = arith.constant 0.000000e+00 : f32
    %12 = vector.broadcast %cst_5 : f32 to vector<2x1x32xf32>
    %13 = arith.maximumf %11, %12 : vector<2x1x32xf32>
    %14 = math.sqrt %13 : vector<2x1x32xf32>
    %cst_6 = arith.constant 9.99999993E-9 : f32
    %15 = vector.broadcast %cst_6 : f32 to vector<2x1x32xf32>
    %16 = arith.addf %14, %15 : vector<2x1x32xf32>
    %cst_7 = arith.constant 1.000000e+00 : f32
    %17 = vector.broadcast %cst_7 : f32 to vector<2x1x32xf32>
    %18 = arith.divf %17, %16 : vector<2x1x32xf32>
    %c0_8 = arith.constant 0 : index
    %c0_9 = arith.constant 0 : index
    %c0_10 = arith.constant 0 : index
    %19 = vector.load %arg1[%c0_8, %c0_9, %c0_10] : memref<2x1x32xf32, #tpu.memory_space<vmem>>, vector<2x1x32xf32>
    %20 = arith.mulf %19, %18 : vector<2x1x32xf32>
    %c0_11 = arith.constant 0 : index
    %c0_12 = arith.constant 0 : index
    %c0_13 = arith.constant 0 : index
    %21 = vector.load %arg2[%c0_11, %c0_12, %c0_13] : memref<2x1x32xf32, #tpu.memory_space<vmem>>, vector<2x1x32xf32>
    %22 = arith.mulf %4, %20 : vector<2x1x32xf32>
    %23 = arith.subf %21, %22 : vector<2x1x32xf32>
    %24 = vector.broadcast %20 : vector<2x1x32xf32> to vector<2x8x32xf32>
    %25 = arith.mulf %0, %24 : vector<2x8x32xf32>
    %26 = vector.broadcast %23 : vector<2x1x32xf32> to vector<2x8x32xf32>
    %27 = arith.addf %25, %26 : vector<2x8x32xf32>
    %c0_14 = arith.constant 0 : index
    %c0_15 = arith.constant 0 : index
    %c0_16 = arith.constant 0 : index
    %28 = vector.load %arg4[%c0_14, %c0_15, %c0_16] : memref<2x8x32xf32, #tpu.memory_space<vmem>>, vector<2x8x32xf32>
    tpu.vector_store %arg4[%c0_14, %c0_15, %c0_16], %27 {strides = array<i32>} : memref<2x8x32xf32, #tpu.memory_space<vmem>>, vector<2x8x32xf32>,
    return
  }
  func.func @transform_0(%arg0: i32) -> (i32, i32, i32) {
    %c0_i32 = arith.constant 0 : i32
    %c0_i32_0 = arith.constant 0 : i32
    %c0_i32_1 = arith.constant 0 : i32
    return %arg0, %c0_i32, %c0_i32_0 : i32, i32, i32
  }
  func.func @transform_1(%arg0: i32) -> (i32, i32, i32) {
    %c0_i32 = arith.constant 0 : i32
    %c0_i32_0 = arith.constant 0 : i32
    %c0_i32_1 = arith.constant 0 : i32
    return %arg0, %c0_i32, %c0_i32_0 : i32, i32, i32
  }
  func.func @transform_2(%arg0: i32) -> (i32, i32, i32) {
    %c0_i32 = arith.constant 0 : i32
    %c0_i32_0 = arith.constant 0 : i32
    %c0_i32_1 = arith.constant 0 : i32
    return %arg0, %c0_i32, %c0_i32_0 : i32, i32, i32
  }
  func.func @transform_3(%arg0: i32) -> (i32, i32, i32) {
    %c0_i32 = arith.constant 0 : i32
    %c0_i32_0 = arith.constant 0 : i32
    %c0_i32_1 = arith.constant 0 : i32
    return %arg0, %c0_i32, %c0_i32_0 : i32, i32, i32
  }
}

</mosaic_0001>

<llo_original>
// kernel: tpu_custom_call.1
$region0: #{tpu_custom_call.1}
  #allocation0 [shape = 'u32[]', space=smem, size = 0x4, offset = 0x4, fixed_abs, tag = 'smem constant byte address 0x4 - core index']
  #allocation1 [shape = 'u32[144,128]{1,0:T(1,128)}', space=vmem, size = 0x12000, scoped, tag = 'internal scratch']
  %s0 = inlined_call_operand.hbm [shape: f32[2,1,32], index: 0, kind: input, shape index: {}]
  %s1 = inlined_call_operand.hbm [shape: f32[2,1,32], index: 1, kind: input, shape index: {}]
  %s2 = inlined_call_operand.hbm [shape: f32[2,8,32], index: 2, kind: input, shape index: {}]
  %s3 = inlined_call_operand.hbm [shape: f32[2,8,32], index: 3, kind: output, shape index: {}]
  %s4 = sld [smem:[#allocation0]]
  $region34: #{tpu_custom_call.1} parent=0
    _
  %s6 = ssub.s32 1, %s4
  %s7 = scalar_select 0, %s6, %s4
  $region1: #{tpu_custom_call.1} parent=0
    #allocation2 [shape = 'u8[1024]{0}', space=vmem, size = 0x400, scoped, tag = 'input window, operand 0, single buffered']
    #allocation3 [shape = 's32[1]{0}', space=sflag, size = 0x4, scoped, tag = 'scoped memory for tpu_custom_call.1']
    #allocation4 [shape = 's32[1]{0}', space=sflag, size = 0x4, scoped, tag = 'scoped memory for tpu_custom_call.1']
    #allocation5 [shape = 'u8[1024]{0}', space=vmem, size = 0x400, scoped, tag = 'input window, operand 1, single buffered']
    #allocation6 [shape = 's32[1]{0}', space=sflag, size = 0x4, scoped, tag = 'scoped memory for tpu_custom_call.1']
    #allocation7 [shape = 'u8[8192]{0}', space=vmem, size = 0x2000, scoped, tag = 'input window, operand 2, single buffered']
    #allocation8 [shape = 'u8[8192]{0}', space=vmem, size = 0x2000, scoped, tag = 'output window, operand 0, single buffered']
    %8 = vsyncpa [#allocation3], 0
    %9 = vsyncpa [#allocation6], 0
    %10 = vsyncpa [#allocation4], 0
    // Predicated region
    $region2: #{tpu_custom_call.1} parent=1 // pred_check
      _
    $region3: #{tpu_custom_call.1} parent=1 // pred_check_branch
      %12 = sbr.rel (0) target = $region5
    $region4: #{tpu_custom_call.1} parent=1 // pred_region
      %s14 = ssub.s32 32, 32
      %15 = vsyncadd [#allocation3], %s14
      %s16 = sshll.u32 [#allocation2], 4
      %s17 = int_to_ptr.vmem [resolvable:$true] %s16
      %22 = dma.hbm_to_vmem [thread:$0]  %s0, 32, %s17, [#allocation3], 16, 16, 1
    $region5: #{tpu_custom_call.1} parent=1 // pred_fallthru
      _
    // Predicated region
    $region6: #{tpu_custom_call.1} parent=1 // pred_check
      _
    $region7: #{tpu_custom_call.1} parent=1 // pred_check_branch
      %24 = sbr.rel (0) target = $region9
    $region8: #{tpu_custom_call.1} parent=1 // pred_region
      %s26 = ssub.s32 32, 32
      %27 = vsyncadd [#allocation6], %s26
      %s28 = sshll.u32 [#allocation5], 4
      %s29 = int_to_ptr.vmem [resolvable:$true] %s28
      %34 = dma.hbm_to_vmem [thread:$0]  %s1, 32, %s29, [#allocation6], 16, 16, 1
    $region9: #{tpu_custom_call.1} parent=1 // pred_fallthru
      _
    // Predicated region
    $region10: #{tpu_custom_call.1} parent=1 // pred_check
      _
    $region11: #{tpu_custom_call.1} parent=1 // pred_check_branch
      %36 = sbr.rel (0) target = $region13
    $region12: #{tpu_custom_call.1} parent=1 // pred_region
      %s38 = ssub.s32 256, 256
      %39 = vsyncadd [#allocation6], %s38
      %s40 = sshll.u32 [#allocation7], 4
      %s41 = int_to_ptr.vmem [resolvable:$true] %s40
      %46 = dma.hbm_to_vmem [thread:$0]  %s2, 256, %s41, [#allocation6], 128, 128, 8
    $region13: #{tpu_custom_call.1} parent=1 // pred_fallthru
      _
    // Predicated region
    $region14: #{tpu_custom_call.1} parent=1 // pred_check
      _
    $region15: #{tpu_custom_call.1} parent=1 // pred_check_branch
      %48 = sbr.rel (0) target = $region17
    $region16: #{tpu_custom_call.1} parent=1 // pred_region
      %49 = dma.done [#allocation3], 32
    $region17: #{tpu_custom_call.1} parent=1 // pred_fallthru
      _
    // Predicated region
    $region18: #{tpu_custom_call.1} parent=1 // pred_check
      _
    $region19: #{tpu_custom_call.1} parent=1 // pred_check_branch
      %51 = sbr.rel (0) target = $region21
    $region20: #{tpu_custom_call.1} parent=1 // pred_region
      %52 = dma.done [#allocation6], 32
    $region21: #{tpu_custom_call.1} parent=1 // pred_fallthru
      _
    // Predicated region
    $region22: #{tpu_custom_call.1} parent=1 // pred_check
      _
    $region23: #{tpu_custom_call.1} parent=1 // pred_check_branch
      %54 = sbr.rel (0) target = $region25
    $region24: #{tpu_custom_call.1} parent=1 // pred_region
      %55 = dma.done [#allocation6], 256
    $region25: #{tpu_custom_call.1} parent=1 // pred_fallthru
      _
    %v56 = vld [vmem:[#allocation7] sm:$0xff]
    %v57 = vld [vmem:[#allocation7 + $0x8] sm:$0xff]
    %vm58 = vcmask 261120
    %v59 = vsel %vm58, %v56, 0.0
    %v60 = vrot.slane %v59, 4
    %v61 = vadd.f32 %v59, %v60
    %v62 = vrot.slane %v61, 2
    %v63 = vadd.f32 %v61, %v62
    %v64 = vrot.slane %v63, 1
    %v65 = vadd.f32 %v63, %v64
    %v66 = vsel %vm58, %v57, 0.0
    %v67 = vrot.slane %v66, 4
    %v68 = vadd.f32 %v66, %v67
    %v69 = vrot.slane %v68, 2
    %v70 = vadd.f32 %v68, %v69
    %v71 = vrot.slane %v70, 1
    %v72 = vadd.f32 %v70, %v71
    %v73 = vrcp.pop 8.0
    %v74 = vmul.f32 %v65, %v73
    %v75 = vmul.f32 %v72, %v73
    %v76 = vmul.f32 %v56, %v56
    %v77 = vmul.f32 %v57, %v57
    %v78 = vsel %vm58, %v76, 0.0
    %v79 = vrot.slane %v78, 4
    %v80 = vadd.f32 %v78, %v79
    %v81 = vrot.slane %v80, 2
    %v82 = vadd.f32 %v80, %v81
    %v83 = vrot.slane %v82, 1
    %v84 = vadd.f32 %v82, %v83
    %v85 = vsel %vm58, %v77, 0.0
    %v86 = vrot.slane %v85, 4
    %v87 = vadd.f32 %v85, %v86
    %v88 = vrot.slane %v87, 2
    %v89 = vadd.f32 %v87, %v88
    %v90 = vrot.slane %v89, 1
    %v91 = vadd.f32 %v89, %v90
    %v92 = vmul.f32 %v84, %v73
    %v93 = vmul.f32 %v91, %v73
    %v94 = vmul.f32 %v74, %v74
    %v95 = vmul.f32 %v75, %v75
    %v96 = vsub.f32 %v92, %v94
    %v97 = vsub.f32 %v93, %v95
    %v98 = vmax.f32 %v96, 0.0
    %v99 = vmax.f32 %v97, 0.0
    %v100 = vrsqrt.pop %v98
    %v101 = vmul.f32 %v98, %v100
    %vm102 = vcmp.eq.f32.partialorder %v98, inf
    %v103 = vsel %vm102, %v98, %v101
    %vm104 = vcmp.eq.f32.partialorder %v98, 0.0
    %v105 = vand.u32 %v98, 2147483648
    %v106 = vsel %vm104, %v105, %v103
    %v107 = vrsqrt.pop %v99
    %v108 = vmul.f32 %v99, %v107
    %vm109 = vcmp.eq.f32.partialorder %v99, inf
    %v110 = vsel %vm109, %v99, %v108
    %vm111 = vcmp.eq.f32.partialorder %v99, 0.0
    %v112 = vand.u32 %v99, 2147483648
    %v113 = vsel %vm111, %v112, %v110
    %v114 = vadd.f32 %v106, 1e-08
    %v115 = vadd.f32 %v113, 1e-08
    %v116 = vrcp.pop %v114
    %v117 = vmul.f32 1.0, %v116
    %v118 = vrcp.pop %v115
    %v119 = vmul.f32 1.0, %v118
    %v120 = vld [vmem:[#allocation2] sm:$0x1]
    %v121 = vld [vmem:[#allocation2 + $0x1] sm:$0x1]
    %v122 = vmul.f32 %v120, %v117
    %v123 = vmul.f32 %v121, %v119
    %v124 = vld [vmem:[#allocation5] sm:$0x1]
    %v125 = vld [vmem:[#allocation5 + $0x1] sm:$0x1]
    %v126 = vmul.f32 %v74, %v122
    %v127 = vmul.f32 %v75, %v123
    %v128 = vsub.f32 %v124, %v126
    %v129 = vsub.f32 %v125, %v127
    %v132 = vlaneseq
    %v133 = vshrl.u32 %v132, 7
    %v134 = vsub.s32 0, %v133
    %v135 = vrot.slane %v122, %v134
    %v136 = vlaneseq
    %v137 = vshrl.u32 %v136, 7
    %v138 = vsub.s32 0, %v137
    %v139 = vrot.slane %v123, %v138
    %v142 = vmul.f32 %v56, %v135
    %v143 = vmul.f32 %v57, %v139
    %v146 = vlaneseq
    %v147 = vshrl.u32 %v146, 7
    %v148 = vsub.s32 0, %v147
    %v149 = vrot.slane %v128, %v148
    %v150 = vlaneseq
    %v151 = vshrl.u32 %v150, 7
    %v152 = vsub.s32 0, %v151
    %v153 = vrot.slane %v129, %v152
    %v156 = vadd.f32 %v142, %v149
    %v157 = vadd.f32 %v143, %v153
    %158 = vst.msk [vmem:[#allocation8] sm:$0xff] %vm58, %v156
    %159 = vst.msk [vmem:[#allocation8 + $0x8] sm:$0xff] %vm58, %v157
    // Predicated region
    $region26: #{tpu_custom_call.1} parent=1 // pred_check
      _
    $region27: #{tpu_custom_call.1} parent=1 // pred_check_branch
      %161 = sbr.rel (0) target = $region29
    $region28: #{tpu_custom_call.1} parent=1 // pred_region
      %s163 = ssub.s32 256, 256
      %164 = vsyncadd [#allocation4], %s163
      %s165 = sshll.u32 [#allocation8], 4
      %s166 = int_to_ptr.vmem [resolvable:$true] %s165
      %171 = dma.vmem_to_hbm [thread:$0]  %s166, 256, %s3, [#allocation4], 128, 128, 8
    $region29: #{tpu_custom_call.1} parent=1 // pred_fallthru
      _
    // Predicated region
    $region30: #{tpu_custom_call.1} parent=1 // pred_check
      _
    $region31: #{tpu_custom_call.1} parent=1 // pred_check_branch
      %173 = sbr.rel (0) target = $region33
    $region32: #{tpu_custom_call.1} parent=1 // pred_region
      %174 = dma.done [#allocation4], 256
    $region33: #{tpu_custom_call.1} parent=1 // pred_fallthru
      _
    %175 = vsyncpa [#allocation3], 1
    %176 = vsyncpa [#allocation6], 1
    %177 = vsyncpa [#allocation4], 1

</llo_original>
